<compile_context>
chip_gen: v6e
topology: v6e:2x2x1
jax: 0.10.0
libtpu: 0.0.40
codegen_flags: <defaults>
</compile_context>

<pallas_src>
import math
import functools

import jax
import jax.numpy as jnp
from jax.experimental import pallas as pl
from jax.experimental.pallas import tpu as pltpu


def arcface_kernel(x_ref, w_ref, lbl_ref, bias_ref, out_ref, loss_ref,
                   inv_xn_s_sc, m_sc, l_sc, t_sc, *,
                   easy_margin, cos_m, sin_m, th, mm, s, tile_c, matmul_dtype):
    c = pl.program_id(1)
    nc = pl.num_programs(1)

    # Per-batch-tile init: s/||x|| (f32) and the online-logsumexp state.
    @pl.when(c == 0)
    def _():
        x32 = x_ref[...].astype(jnp.float32)
        x_sq = jnp.sum(x32 * x32, axis=1, keepdims=True)            # [TB, 1]
        # F.normalize uses max(||x||, 1e-12); guard the squared norm with eps^2.
        inv_xn_s_sc[...] = s * jax.lax.rsqrt(jnp.maximum(x_sq, 1e-24))
        m_sc[...] = jnp.full(m_sc.shape, -jnp.inf, dtype=jnp.float32)
        l_sc[...] = jnp.zeros(l_sc.shape, dtype=jnp.float32)
        t_sc[...] = jnp.zeros(t_sc.shape, dtype=jnp.float32)

    # W arrives pre-normalized (and already in the matmul dtype); contract the
    # last dims of both operands so W stays row-major.  f32 MXU accumulation.
    raw = jax.lax.dot_general(x_ref[...].astype(matmul_dtype), w_ref[...],
                              (((1,), (1,)), ((), ())),
                              preferred_element_type=jnp.float32)    # [TB, TC]
    logits = raw * inv_xn_s_sc[...]                                  # = s * cosine

    tb, tc = logits.shape
    lbl_local = lbl_ref[...] - c * tile_c                            # [TB, 1]
    col = jax.lax.broadcasted_iota(jnp.int32, (tb, tc), 1)
    one_hot = col == lbl_local
    in_tile = (lbl_local >= 0) & (lbl_local < tile_c)                # [TB, 1]

    # Margin math only on the per-row target column ([TB,1], not [TB,TC]).
    tgt_s = jnp.sum(jnp.where(one_hot, logits, 0.0), axis=1, keepdims=True)
    tgt_cos = tgt_s * (1.0 / s)
    # Clamp: fp rounding can push |cosine| slightly above 1 -> NaN in sqrt.
    sine = jnp.sqrt(jnp.maximum(1.0 - tgt_cos * tgt_cos, 0.0))
    ctm = tgt_cos * cos_m - sine * sin_m
    if easy_margin:
        ctm = jnp.where(tgt_cos > 0.0, ctm, tgt_cos)
    else:
        ctm = jnp.where(tgt_cos > th, ctm, tgt_cos - mm)
    delta = jnp.where(in_tile, (ctm - tgt_cos) * s, 0.0)             # [TB, 1]

    # output = s*cosine everywhere except the label column, which gets +delta.
    final = logits + jnp.where(one_hot, delta, 0.0)
    out_ref[...] = final.astype(out_ref.dtype)

    # Fused cross-entropy: online logsumexp across class tiles.  bias_ref is 0
    # for valid classes and -1e30 for padded ones (every tile has >=1 valid
    # class by construction, so the running max stays well-conditioned).
    masked = final + bias_ref[...]
    m_prev = m_sc[...]
    m_new = jnp.maximum(m_prev, jnp.max(masked, axis=1, keepdims=True))
    alpha = jnp.exp(m_prev - m_new)
    l_sc[...] = alpha * l_sc[...] + jnp.sum(jnp.exp(masked - m_new),
                                            axis=1, keepdims=True)
    m_sc[...] = m_new
    # Margin-adjusted target logit (zero contribution if label not in tile).
    t_sc[...] = t_sc[...] + tgt_s + delta

    @pl.when(c == nc - 1)
    def _():
        # per-row CE loss: logsumexp(logits) - logit[label]
        loss_ref[...] = m_sc[...] + jnp.log(l_sc[...]) - t_sc[...]


def _round_up(v, m):
    return ((v + m - 1) // m) * m


def _vmem_limit_bytes():
    cap = 128 * 1024 * 1024
    try:
        cap = int(getattr(pltpu.get_tpu_info(), "vmem_capacity_bytes", cap))
    except Exception:
        pass
    # Leave headroom for compiler scratch; self-caps to ~48 MiB on 64 MiB v7x.
    return min((cap * 3) // 4, 100 * 1024 * 1024)


def arcface_forward(x, weight, label, *, easy_margin=False, margin_m=0.5,
                    banjing_s=64.0, tile_b=None, tile_c=None,
                    matmul_dtype=jnp.bfloat16):
    """Returns (output [B, C] f32, mean cross-entropy loss scalar)."""
    B, E = x.shape
    C, E2 = weight.shape
    assert E == E2
    cos_m = math.cos(margin_m)
    sin_m = math.sin(margin_m)
    th = math.cos(math.pi - margin_m)
    mm = math.sin(math.pi - margin_m) * margin_m

    # ---- tile selection ----------------------------------------------------
    # Batch tiles up to 256 rows; class tiles lane-dense and 128-aligned.
    TB = tile_b if tile_b is not None else min(_round_up(B, 8), 256)
    TB = max(8, _round_up(TB, 8))

    vmem_limit = _vmem_limit_bytes()
    budget = (vmem_limit * 4) // 5
    w_bytes = jnp.dtype(matmul_dtype).itemsize
    if tile_c is None:
        TC = min(_round_up(C, 128), 2048)

        def _fits(tc):
            use = (2 * tc * E * w_bytes       # double-buffered W tiles
                   + 2 * TB * tc * 4          # double-buffered output tiles
                   + 2 * TB * E * 4           # x tile (double-buffered)
                   + 6 * TB * tc * 4          # live f32 [TB,TC] intermediates
                   + 4 * tc * 4)              # bias row
            return use <= budget

        while TC > 128 and not _fits(TC):
            TC -= 128
    else:
        TC = tile_c
    TC = max(128, _round_up(TC, 128))
    TC = min(TC, _round_up(C, 128))

    Bp = _round_up(B, TB)
    Cp = _round_up(C, TC)
    nb, ncls = Bp // TB, Cp // TC
    # TODO(synk): on v7x (2 TCs) with nb == 1 the 'parallel' batch axis gives
    # the second core nothing to do; a class-split with merged partial LSE
    # state would recover it for small batches.

    # ---- host-side prep ----------------------------------------------------
    # Pre-normalize W once in f32 (removes per-grid-step W-norm work), then
    # cast to the matmul dtype so the streamed tiles are half-width in HBM.
    w32 = weight.astype(jnp.float32)
    w_n = w32 * jax.lax.rsqrt(jnp.maximum(
        jnp.sum(w32 * w32, axis=1, keepdims=True), 1e-24))
    wp = jnp.zeros((Cp, E), matmul_dtype).at[:C].set(w_n.astype(matmul_dtype))

    xp = x.astype(jnp.float32)
    if Bp != B:
        xp = jnp.zeros((Bp, E), jnp.float32).at[:B].set(xp)
    lbl2d = jnp.zeros((Bp, 1), jnp.int32).at[:B, 0].set(
        label.reshape(-1).astype(jnp.int32))
    bias = jnp.where(jnp.arange(Cp) < C, 0.0, -1e30).astype(jnp.float32)
    bias = bias.reshape(1, Cp)

    kernel = functools.partial(
        arcface_kernel,
        easy_margin=bool(easy_margin), cos_m=cos_m, sin_m=sin_m, th=th, mm=mm,
        s=float(banjing_s), tile_c=TC, matmul_dtype=matmul_dtype)

    cost = pl.CostEstimate(
        flops=2 * Bp * Cp * E + 8 * Bp * Cp,
        transcendentals=Bp * Cp + 4 * Bp,
        bytes_accessed=(Bp * E * 4                 # x (read once per batch tile)
                        + nb * Cp * E * w_bytes    # W re-streamed per batch tile
                        + Bp * Cp * 4              # logits writeback
                        + Bp * 8 + Cp * 4))

    out, loss_rows = pl.pallas_call(
        kernel,
        out_shape=(
            jax.ShapeDtypeStruct((Bp, Cp), jnp.float32),
            jax.ShapeDtypeStruct((Bp, 1), jnp.float32),
        ),
        grid_spec=pltpu.PrefetchScalarGridSpec(
            num_scalar_prefetch=0,
            grid=(nb, ncls),
            in_specs=[
                pl.BlockSpec((TB, E), lambda b, c: (b, 0)),   # x: resident per batch tile
                pl.BlockSpec((TC, E), lambda b, c: (c, 0)),   # normalized W (bf16) stream
                pl.BlockSpec((TB, 1), lambda b, c: (b, 0)),   # labels
                pl.BlockSpec((1, TC), lambda b, c: (0, c)),   # padded-class bias row
            ],
            out_specs=(
                pl.BlockSpec((TB, TC), lambda b, c: (b, c)),  # scaled logits
                pl.BlockSpec((TB, 1), lambda b, c: (b, 0)),   # per-row CE loss
            ),
            scratch_shapes=[
                pltpu.VMEM((TB, 1), jnp.float32),   # s / ||x||
                pltpu.VMEM((TB, 1), jnp.float32),   # running max
                pltpu.VMEM((TB, 1), jnp.float32),   # running sum
                pltpu.VMEM((TB, 1), jnp.float32),   # target logit (with margin)
            ],
        ),
        compiler_params=pltpu.CompilerParams(
            dimension_semantics=("parallel", "arbitrary"),
            vmem_limit_bytes=vmem_limit),
        cost_estimate=cost,
    )(xp, wp, lbl2d, bias)

    out = out[:B, :C]
    arcloss = jnp.mean(loss_rows[:B, 0])
    return out, arcloss


if __name__ == "__main__":
    # Small shapes consistent with the module: batch=8, emb_size=128, classes=256
    B, E, C = 8, 128, 256
    key = jax.random.PRNGKey(0)
    kx, kw, kl = jax.random.split(key, 3)

    x = jax.random.normal(kx, (B, E), dtype=jnp.float32)
    # xavier_uniform_ for weight of shape (num_classes, emb_size)
    bound = math.sqrt(6.0 / (C + E))
    weight = jax.random.uniform(kw, (C, E), minval=-bound, maxval=bound,
                                dtype=jnp.float32)
    label = jax.random.randint(kl, (B,), 0, C, dtype=jnp.int32)

    # Pure-JAX f32 reference.
    def reference(x, weight, label, m=0.5, s=64.0, easy_margin=False):
        xn = x / jnp.maximum(jnp.linalg.norm(x, axis=1, keepdims=True), 1e-12)
        wn = weight / jnp.maximum(jnp.linalg.norm(weight, axis=1, keepdims=True), 1e-12)
        cosine = xn @ wn.T
        sine = jnp.sqrt(jnp.maximum(1.0 - cosine ** 2, 0.0))
        ctm = cosine * math.cos(m) - sine * math.sin(m)
        if easy_margin:
            ctm = jnp.where(cosine > 0.0, ctm, cosine)
        else:
            ctm = jnp.where(cosine > math.cos(math.pi - m), ctm,
                            cosine - math.sin(math.pi - m) * m)
        one_hot = jax.nn.one_hot(label, weight.shape[0], dtype=jnp.float32)
        out = (one_hot * ctm + (1.0 - one_hot) * cosine) * s
        loss = jnp.mean(jax.nn.logsumexp(out, axis=1)
                        - jnp.sum(one_hot * out, axis=1))
        return out, loss

    ref_out, ref_loss = reference(x, weight, label)

    # Default (bf16 MXU) path -- tolerance loosened: s=64 amplifies bf16
    # cosine rounding to ~1e-2..1e-1 in the logits.
    output, arcloss = arcface_forward(x, weight, label, easy_margin=False,
                                      margin_m=0.5, banjing_s=64.0)
    jax.block_until_ready((output, arcloss))
    assert jnp.allclose(output, ref_out, atol=0.25, rtol=1e-2), \
        float(jnp.max(jnp.abs(output - ref_out)))
    assert jnp.allclose(arcloss, ref_loss, atol=0.15, rtol=1e-2), \
        (float(arcloss), float(ref_loss))

    # f32-matmul path: tight check of the kernel logic.
    out32, loss32 = arcface_forward(x, weight, label, easy_margin=False,
                                    margin_m=0.5, banjing_s=64.0,
                                    matmul_dtype=jnp.float32)
    jax.block_until_ready((out32, loss32))
    assert jnp.allclose(out32, ref_out, atol=2e-3, rtol=1e-3), \
        float(jnp.max(jnp.abs(out32 - ref_out)))
    assert jnp.allclose(loss32, ref_loss, atol=2e-3, rtol=1e-3)

    print("KERNEL_OK")
</pallas_src>

<mosaic_0001>
module attributes {stable_mosaic.version = 11 : i64} {
  func.func @arcface_kernel(%arg0: i32, %arg1: i32, %arg2: memref<8x128xf32, #tpu.memory_space<vmem>>, %arg3: memref<256x128xbf16, #tpu.memory_space<vmem>>, %arg4: memref<8x1xi32, #tpu.memory_space<vmem>>, %arg5: memref<1x256xf32, #tpu.memory_space<vmem>>, %arg6: memref<8x256xf32, #tpu.memory_space<vmem>>, %arg7: memref<8x1xf32, #tpu.memory_space<vmem>>, %arg8: memref<8x1xf32, #tpu.memory_space<vmem>>, %arg9: memref<8x1xf32, #tpu.memory_space<vmem>>, %arg10: memref<8x1xf32, #tpu.memory_space<vmem>>, %arg11: memref<8x1xf32, #tpu.memory_space<vmem>>) attributes {dimension_semantics = [#tpu.dimension_semantics<parallel>, #tpu.dimension_semantics<arbitrary>], iteration_bounds = array<i64: 1, 1>, scalar_prefetch = 0 : i64, scratch_operands = 4 : i64, tpu.core_type = #tpu.core_type<tc>, window_params = [{transform_indices = @transform_0, window_bounds = array<i64: 8, 128>}, {transform_indices = @transform_1, window_bounds = array<i64: 256, 128>}, {transform_indices = @transform_2, window_bounds = array<i64: 8, 1>}, {transform_indices = @transform_3, window_bounds = array<i64: 1, 256>}, {transform_indices = @transform_4, window_bounds = array<i64: 8, 256>}, {transform_indices = @transform_5, window_bounds = array<i64: 8, 1>}]} {
    %c0_i32 = arith.constant 0 : i32
    %0 = arith.cmpi eq, %arg1, %c0_i32 : i32
    %1 = arith.extui %0 : i1 to i32
    %c0_i32_0 = arith.constant 0 : i32
    %2 = arith.cmpi ne, %1, %c0_i32_0 : i32
    scf.if %2 {
      %c0_42 = arith.constant 0 : index
      %c0_43 = arith.constant 0 : index
      %81 = vector.load %arg2[%c0_42, %c0_43] : memref<8x128xf32, #tpu.memory_space<vmem>>, vector<8x128xf32>
      %82 = arith.mulf %81, %81 : vector<8x128xf32>
      %cst_44 = arith.constant dense<0.000000e+00> : vector<8xf32>
      %83 = vector.multi_reduction <add>, %82, %cst_44 [1] : vector<8x128xf32> to vector<8xf32>
      %84 = vector.shape_cast %83 : vector<8xf32> to vector<8x1xf32>
      %cst_45 = arith.constant 1.000000e-24 : f32
      %85 = vector.broadcast %cst_45 : f32 to vector<8x1xf32>
      %86 = arith.maximumf %84, %85 : vector<8x1xf32>
      %87 = math.rsqrt %86 : vector<8x1xf32>
      %cst_46 = arith.constant 6.400000e+01 : f32
      %88 = vector.broadcast %cst_46 : f32 to vector<8x1xf32>
      %89 = arith.mulf %88, %87 : vector<8x1xf32>
      %c0_47 = arith.constant 0 : index
      %c0_48 = arith.constant 0 : index
      %90 = vector.load %arg8[%c0_47, %c0_48] : memref<8x1xf32, #tpu.memory_space<vmem>>, vector<8x1xf32>
      tpu.vector_store %arg8[%c0_47, %c0_48], %89 {strides = array<i32>} : memref<8x1xf32, #tpu.memory_space<vmem>>, vector<8x1xf32>,
      %cst_49 = arith.constant 0xFF800000 : f32
      %91 = vector.broadcast %cst_49 : f32 to vector<8x1xf32>
      %c0_50 = arith.constant 0 : index
      %c0_51 = arith.constant 0 : index
      %92 = vector.load %arg9[%c0_50, %c0_51] : memref<8x1xf32, #tpu.memory_space<vmem>>, vector<8x1xf32>
      tpu.vector_store %arg9[%c0_50, %c0_51], %91 {strides = array<i32>} : memref<8x1xf32, #tpu.memory_space<vmem>>, vector<8x1xf32>,
      %cst_52 = arith.constant 0.000000e+00 : f32
      %93 = vector.broadcast %cst_52 : f32 to vector<8x1xf32>
      %c0_53 = arith.constant 0 : index
      %c0_54 = arith.constant 0 : index
      %94 = vector.load %arg10[%c0_53, %c0_54] : memref<8x1xf32, #tpu.memory_space<vmem>>, vector<8x1xf32>
      tpu.vector_store %arg10[%c0_53, %c0_54], %93 {strides = array<i32>} : memref<8x1xf32, #tpu.memory_space<vmem>>, vector<8x1xf32>,
      %cst_55 = arith.constant 0.000000e+00 : f32
      %95 = vector.broadcast %cst_55 : f32 to vector<8x1xf32>
      %c0_56 = arith.constant 0 : index
      %c0_57 = arith.constant 0 : index
      %96 = vector.load %arg11[%c0_56, %c0_57] : memref<8x1xf32, #tpu.memory_space<vmem>>, vector<8x1xf32>
      tpu.vector_store %arg11[%c0_56, %c0_57], %95 {strides = array<i32>} : memref<8x1xf32, #tpu.memory_space<vmem>>, vector<8x1xf32>,
    } else {
    }
    %c0 = arith.constant 0 : index
    %c0_1 = arith.constant 0 : index
    %3 = vector.load %arg2[%c0, %c0_1] : memref<8x128xf32, #tpu.memory_space<vmem>>, vector<8x128xf32>
    %4 = arith.truncf %3 : vector<8x128xf32> to vector<8x128xbf16>
    %c0_2 = arith.constant 0 : index
    %c0_3 = arith.constant 0 : index
    %5 = vector.load %arg3[%c0_2, %c0_3] : memref<256x128xbf16, #tpu.memory_space<vmem>>, vector<256x128xbf16>
    %cst = arith.constant dense<0.000000e+00> : vector<8x256xf32>
    %6 = tpu.matmul %4, %5, %cst {dimension_numbers = #tpu.dot_dimension_numbers<[1], [1], [0], [0], [0, 0, 1, 0], [], []>} : vector<8x128xbf16>, vector<256x128xbf16>, vector<8x256xf32> -> vector<8x256xf32>
    %c0_4 = arith.constant 0 : index
    %c0_5 = arith.constant 0 : index
    %7 = vector.load %arg8[%c0_4, %c0_5] : memref<8x1xf32, #tpu.memory_space<vmem>>, vector<8x1xf32>
    %8 = vector.broadcast %7 : vector<8x1xf32> to vector<8x256xf32>
    %9 = arith.mulf %6, %8 : vector<8x256xf32>
    %c0_6 = arith.constant 0 : index
    %c0_7 = arith.constant 0 : index
    %10 = vector.load %arg4[%c0_6, %c0_7] : memref<8x1xi32, #tpu.memory_space<vmem>>, vector<8x1xi32>
    %c256_i32 = arith.constant 256 : i32
    %11 = arith.muli %arg1, %c256_i32 : i32
    %12 = vector.broadcast %11 : i32 to vector<8x1xi32>
    %13 = arith.subi %10, %12 : vector<8x1xi32>
    %14 = tpu.iota {dimensions = array<i32: 1>} : vector<8x256xi32>
    %15 = vector.broadcast %13 : vector<8x1xi32> to vector<8x256xi32>
    %16 = arith.cmpi eq, %14, %15 : vector<8x256xi32>
    %c0_i32_8 = arith.constant 0 : i32
    %17 = vector.broadcast %c0_i32_8 : i32 to vector<8x1xi32>
    %18 = arith.cmpi sge, %13, %17 : vector<8x1xi32>
    %c256_i32_9 = arith.constant 256 : i32
    %19 = vector.broadcast %c256_i32_9 : i32 to vector<8x1xi32>
    %20 = arith.cmpi slt, %13, %19 : vector<8x1xi32>
    %21 = arith.andi %18, %20 : vector<8x1xi1>
    %cst_10 = arith.constant 0.000000e+00 : f32
    %22 = vector.broadcast %cst_10 : f32 to vector<8x256xf32>
    %23 = arith.select %16, %9, %22 : vector<8x256xi1>, vector<8x256xf32>
    %cst_11 = arith.constant dense<0.000000e+00> : vector<8xf32>
    %24 = vector.multi_reduction <add>, %23, %cst_11 [1] : vector<8x256xf32> to vector<8xf32>
    %25 = vector.shape_cast %24 : vector<8xf32> to vector<8x1xf32>
    %cst_12 = arith.constant 1.562500e-02 : f32
    %26 = vector.broadcast %cst_12 : f32 to vector<8x1xf32>
    %27 = arith.mulf %25, %26 : vector<8x1xf32>
    %28 = arith.mulf %27, %27 : vector<8x1xf32>
    %cst_13 = arith.constant 1.000000e+00 : f32
    %29 = vector.broadcast %cst_13 : f32 to vector<8x1xf32>
    %30 = arith.subf %29, %28 : vector<8x1xf32>
    %cst_14 = arith.constant 0.000000e+00 : f32
    %31 = vector.broadcast %cst_14 : f32 to vector<8x1xf32>
    %32 = arith.maximumf %30, %31 : vector<8x1xf32>
    %33 = math.sqrt %32 : vector<8x1xf32>
    %cst_15 = arith.constant 0.87758255 : f32
    %34 = vector.broadcast %cst_15 : f32 to vector<8x1xf32>
    %35 = arith.mulf %27, %34 : vector<8x1xf32>
    %cst_16 = arith.constant 0.47942555 : f32
    %36 = vector.broadcast %cst_16 : f32 to vector<8x1xf32>
    %37 = arith.mulf %33, %36 : vector<8x1xf32>
    %38 = arith.subf %35, %37 : vector<8x1xf32>
    %cst_17 = arith.constant -0.87758255 : f32
    %39 = vector.broadcast %cst_17 : f32 to vector<8x1xf32>
    %40 = arith.cmpf ogt, %27, %39 : vector<8x1xf32>
    %cst_18 = arith.constant 0.239712775 : f32
    %41 = vector.broadcast %cst_18 : f32 to vector<8x1xf32>
    %42 = arith.subf %27, %41 : vector<8x1xf32>
    %43 = arith.select %40, %38, %42 : vector<8x1xi1>, vector<8x1xf32>
    %44 = arith.subf %43, %27 : vector<8x1xf32>
    %cst_19 = arith.constant 6.400000e+01 : f32
    %45 = vector.broadcast %cst_19 : f32 to vector<8x1xf32>
    %46 = arith.mulf %44, %45 : vector<8x1xf32>
    %cst_20 = arith.constant 0.000000e+00 : f32
    %47 = vector.broadcast %cst_20 : f32 to vector<8x1xf32>
    %48 = arith.select %21, %46, %47 : vector<8x1xi1>, vector<8x1xf32>
    %cst_21 = arith.constant 0.000000e+00 : f32
    %49 = vector.shape_cast %48 : vector<8x1xf32> to vector<8x1xf32>
    %50 = vector.broadcast %49 : vector<8x1xf32> to vector<8x256xf32>
    %51 = vector.broadcast %cst_21 : f32 to vector<8x256xf32>
    %52 = arith.select %16, %50, %51 : vector<8x256xi1>, vector<8x256xf32>
    %53 = arith.addf %9, %52 : vector<8x256xf32>
    %c0_22 = arith.constant 0 : index
    %c0_23 = arith.constant 0 : index
    %54 = vector.load %arg6[%c0_22, %c0_23] : memref<8x256xf32, #tpu.memory_space<vmem>>, vector<8x256xf32>
    tpu.vector_store %arg6[%c0_22, %c0_23], %53 {strides = array<i32>} : memref<8x256xf32, #tpu.memory_space<vmem>>, vector<8x256xf32>,
    %c0_24 = arith.constant 0 : index
    %c0_25 = arith.constant 0 : index
    %55 = vector.load %arg5[%c0_24, %c0_25] : memref<1x256xf32, #tpu.memory_space<vmem>>, vector<1x256xf32>
    %56 = vector.broadcast %55 : vector<1x256xf32> to vector<8x256xf32>
    %57 = arith.addf %53, %56 : vector<8x256xf32>
    %c0_26 = arith.constant 0 : index
    %c0_27 = arith.constant 0 : index
    %58 = vector.load %arg9[%c0_26, %c0_27] : memref<8x1xf32, #tpu.memory_space<vmem>>, vector<8x1xf32>
    %cst_28 = arith.constant dense<0xFF800000> : vector<8xf32>
    %59 = vector.multi_reduction <maximumf>, %57, %cst_28 [1] : vector<8x256xf32> to vector<8xf32>
    %60 = vector.shape_cast %59 : vector<8xf32> to vector<8x1xf32>
    %61 = arith.maximumf %58, %60 : vector<8x1xf32>
    %62 = arith.subf %58, %61 : vector<8x1xf32>
    %63 = math.exp %62 : vector<8x1xf32>
    %c0_29 = arith.constant 0 : index
    %c0_30 = arith.constant 0 : index
    %64 = vector.load %arg10[%c0_29, %c0_30] : memref<8x1xf32, #tpu.memory_space<vmem>>, vector<8x1xf32>
    %65 = arith.mulf %63, %64 : vector<8x1xf32>
    %66 = vector.broadcast %61 : vector<8x1xf32> to vector<8x256xf32>
    %67 = arith.subf %57, %66 : vector<8x256xf32>
    %68 = math.exp %67 : vector<8x256xf32>
    %cst_31 = arith.constant dense<0.000000e+00> : vector<8xf32>
    %69 = vector.multi_reduction <add>, %68, %cst_31 [1] : vector<8x256xf32> to vector<8xf32>
    %70 = vector.shape_cast %69 : vector<8xf32> to vector<8x1xf32>
    %71 = arith.addf %65, %70 : vector<8x1xf32>
    %c0_32 = arith.constant 0 : index
    %c0_33 = arith.constant 0 : index
    %72 = vector.load %arg10[%c0_32, %c0_33] : memref<8x1xf32, #tpu.memory_space<vmem>>, vector<8x1xf32>
    tpu.vector_store %arg10[%c0_32, %c0_33], %71 {strides = array<i32>} : memref<8x1xf32, #tpu.memory_space<vmem>>, vector<8x1xf32>,
    %c0_34 = arith.constant 0 : index
    %c0_35 = arith.constant 0 : index
    %73 = vector.load %arg9[%c0_34, %c0_35] : memref<8x1xf32, #tpu.memory_space<vmem>>, vector<8x1xf32>
    tpu.vector_store %arg9[%c0_34, %c0_35], %61 {strides = array<i32>} : memref<8x1xf32, #tpu.memory_space<vmem>>, vector<8x1xf32>,
    %c0_36 = arith.constant 0 : index
    %c0_37 = arith.constant 0 : index
    %74 = vector.load %arg11[%c0_36, %c0_37] : memref<8x1xf32, #tpu.memory_space<vmem>>, vector<8x1xf32>
    %75 = arith.addf %74, %25 : vector<8x1xf32>
    %76 = arith.addf %75, %48 : vector<8x1xf32>
    %c0_38 = arith.constant 0 : index
    %c0_39 = arith.constant 0 : index
    %77 = vector.load %arg11[%c0_38, %c0_39] : memref<8x1xf32, #tpu.memory_space<vmem>>, vector<8x1xf32>
    tpu.vector_store %arg11[%c0_38, %c0_39], %76 {strides = array<i32>} : memref<8x1xf32, #tpu.memory_space<vmem>>, vector<8x1xf32>,
    %c0_i32_40 = arith.constant 0 : i32
    %78 = arith.cmpi eq, %arg1, %c0_i32_40 : i32
    %79 = arith.extui %78 : i1 to i32
    %c0_i32_41 = arith.constant 0 : i32
    %80 = arith.cmpi ne, %79, %c0_i32_41 : i32
    scf.if %80 {
      %c0_42 = arith.constant 0 : index
      %c0_43 = arith.constant 0 : index
      %81 = vector.load %arg9[%c0_42, %c0_43] : memref<8x1xf32, #tpu.memory_space<vmem>>, vector<8x1xf32>
      %c0_44 = arith.constant 0 : index
      %c0_45 = arith.constant 0 : index
      %82 = vector.load %arg10[%c0_44, %c0_45] : memref<8x1xf32, #tpu.memory_space<vmem>>, vector<8x1xf32>
      %83 = math.log %82 : vector<8x1xf32>
      %84 = arith.addf %81, %83 : vector<8x1xf32>
      %c0_46 = arith.constant 0 : index
      %c0_47 = arith.constant 0 : index
      %85 = vector.load %arg11[%c0_46, %c0_47] : memref<8x1xf32, #tpu.memory_space<vmem>>, vector<8x1xf32>
      %86 = arith.subf %84, %85 : vector<8x1xf32>
      %c0_48 = arith.constant 0 : index
      %c0_49 = arith.constant 0 : index
      %87 = vector.load %arg7[%c0_48, %c0_49] : memref<8x1xf32, #tpu.memory_space<vmem>>, vector<8x1xf32>
      tpu.vector_store %arg7[%c0_48, %c0_49], %86 {strides = array<i32>} : memref<8x1xf32, #tpu.memory_space<vmem>>, vector<8x1xf32>,
    } else {
    }
    return
  }
  func.func @transform_0(%arg0: i32, %arg1: i32) -> (i32, i32) {
    %c0_i32 = arith.constant 0 : i32
    %c0_i32_0 = arith.constant 0 : i32
    return %arg0, %c0_i32 : i32, i32
  }
  func.func @transform_1(%arg0: i32, %arg1: i32) -> (i32, i32) {
    %c0_i32 = arith.constant 0 : i32
    %c0_i32_0 = arith.constant 0 : i32
    return %arg1, %c0_i32 : i32, i32
  }
  func.func @transform_2(%arg0: i32, %arg1: i32) -> (i32, i32) {
    %c0_i32 = arith.constant 0 : i32
    %c0_i32_0 = arith.constant 0 : i32
    return %arg0, %c0_i32 : i32, i32
  }
  func.func @transform_3(%arg0: i32, %arg1: i32) -> (i32, i32) {
    %c0_i32 = arith.constant 0 : i32
    %c0_i32_0 = arith.constant 0 : i32
    return %c0_i32, %arg1 : i32, i32
  }
  func.func @transform_4(%arg0: i32, %arg1: i32) -> (i32, i32) {
    %c0_i32 = arith.constant 0 : i32
    return %arg0, %arg1 : i32, i32
  }
  func.func @transform_5(%arg0: i32, %arg1: i32) -> (i32, i32) {
    %c0_i32 = arith.constant 0 : i32
    %c0_i32_0 = arith.constant 0 : i32
    return %arg0, %c0_i32 : i32, i32
  }
}

</mosaic_0001>

<llo_original>
// kernel: tpu_custom_call.1
$region0: #{tpu_custom_call.1}
  #allocation0 [shape = 'u32[]', space=smem, size = 0x4, offset = 0x4, fixed_abs, tag = 'smem constant byte address 0x4 - core index']
  #allocation1 [shape = 'u32[144,128]{1,0:T(1,128)}', space=vmem, size = 0x12000, scoped, tag = 'internal scratch']
  #allocation2 [shape = 'f32[8,1]{1,0:T(8,128)}', space=vmem, size = 0x1000, scoped, tag = 'scratch operand']
  #allocation3 [shape = 'f32[8,1]{1,0:T(8,128)}', space=vmem, size = 0x1000, scoped, tag = 'scratch operand']
  #allocation4 [shape = 'f32[8,1]{1,0:T(8,128)}', space=vmem, size = 0x1000, scoped, tag = 'scratch operand']
  #allocation5 [shape = 'f32[8,1]{1,0:T(8,128)}', space=vmem, size = 0x1000, scoped, tag = 'scratch operand']
  %s0 = inlined_call_operand.vmem [shape: f32[8,128], index: 0, kind: input, shape index: {}]
  %s1 = inlined_call_operand.hbm [shape: bf16[256,128], index: 1, kind: input, shape index: {}]
  %s2 = inlined_call_operand.vmem [shape: s32[8,1], index: 2, kind: input, shape index: {}]
  %s3 = inlined_call_operand.vmem [shape: f32[1,256], index: 3, kind: input, shape index: {}]
  %s4 = inlined_call_operand.hbm [shape: f32[8,256], index: 4, kind: output, shape index: {0}]
  %s5 = inlined_call_operand.vmem [shape: f32[8,1], index: 5, kind: output, shape index: {1}]
  %6 = xla_tuple %s4, %s5
  %s7 = sld [smem:[#allocation0]]
  $region46: #{tpu_custom_call.1} parent=0
    _
  %s9 = ssub.s32 1, %s7
  %s10 = scalar_select 0, %s9, %s7
  $region1: #{tpu_custom_call.1} parent=0
    #allocation6 [shape = 'u8[65536]{0}', space=vmem, size = 0x10000, scoped, tag = 'input window, operand 1, single buffered']
    #allocation7 [shape = 's32[1]{0}', space=sflag, size = 0x4, scoped, tag = 'scoped memory for tpu_custom_call.1']
    #allocation8 [shape = 's32[1]{0}', space=sflag, size = 0x4, scoped, tag = 'scoped memory for tpu_custom_call.1']
    #allocation9 [shape = 'u8[8192]{0}', space=vmem, size = 0x2000, scoped, tag = 'output window, operand 0, single buffered']
    %11 = vsyncpa [#allocation7], 0
    %12 = vsyncpa [#allocation8], 0
    // Predicated region
    $region2: #{tpu_custom_call.1} parent=1 // pred_check
      _
    $region3: #{tpu_custom_call.1} parent=1 // pred_check_branch
      %14 = sbr.rel (0) target = $region5
    $region4: #{tpu_custom_call.1} parent=1 // pred_region
      _
    $region5: #{tpu_custom_call.1} parent=1 // pred_fallthru
      _
    // Predicated region
    $region6: #{tpu_custom_call.1} parent=1 // pred_check
      _
    $region7: #{tpu_custom_call.1} parent=1 // pred_check_branch
      %16 = sbr.rel (0) target = $region9
    $region8: #{tpu_custom_call.1} parent=1 // pred_region
      %s18 = ssub.s32 2048, 2048
      %19 = vsyncadd [#allocation7], %s18
      %s20 = sshll.u32 [#allocation6], 4
      %s21 = int_to_ptr.vmem [resolvable:$true] %s20
      %26 = dma.hbm_to_vmem [thread:$0]  %s1, 2048, %s21, [#allocation7], 64, 64, 4
    $region9: #{tpu_custom_call.1} parent=1 // pred_fallthru
      _
    // Predicated region
    $region10: #{tpu_custom_call.1} parent=1 // pred_check
      _
    $region11: #{tpu_custom_call.1} parent=1 // pred_check_branch
      %28 = sbr.rel (0) target = $region13
    $region12: #{tpu_custom_call.1} parent=1 // pred_region
      _
    $region13: #{tpu_custom_call.1} parent=1 // pred_fallthru
      _
    // Predicated region
    $region14: #{tpu_custom_call.1} parent=1 // pred_check
      _
    $region15: #{tpu_custom_call.1} parent=1 // pred_check_branch
      %30 = sbr.rel (0) target = $region17
    $region16: #{tpu_custom_call.1} parent=1 // pred_region
      _
    $region17: #{tpu_custom_call.1} parent=1 // pred_fallthru
      _
    // Predicated region
    $region18: #{tpu_custom_call.1} parent=1 // pred_check
      _
    $region19: #{tpu_custom_call.1} parent=1 // pred_check_branch
      %32 = sbr.rel (0) target = $region21
    $region20: #{tpu_custom_call.1} parent=1 // pred_region
      %33 = dma.done [#allocation7], 2048
    $region21: #{tpu_custom_call.1} parent=1 // pred_fallthru
      _
    %p35 = scmp.eq.s32.totalorder 0, 0
    // Predicated region
    $region22: #{tpu_custom_call.1} parent=1 // pred_check
      %p36 = pneg %p35
    $region23: #{tpu_custom_call.1} parent=1 // pred_check_branch
      %38 = sbr.rel (%p36) target = $region25
    $region24: #{tpu_custom_call.1} parent=1 // pred_region
      %v39 = vld [vmem:[%s0] sm:$0xff]
      %v40 = vmul.f32 %v39, %v39
      %41 = vadd.xlane.f32.xlu0 %v40
      %v42 = vpop.xlane.xlu0 %41
      %v43 = vmax.f32 %v42, 1e-24
      %v44 = vrsqrt.pop %v43
      %v45 = vmul.f32 %v44, 64.0
      %vm46 = vcmask 7168
      %47 = vst.msk [vmem:[#allocation2] sm:$0xff] %vm46, %v45
      %48 = vst.msk [vmem:[#allocation3] sm:$0xff] %vm46, -inf
      %49 = vst.msk [vmem:[#allocation4] sm:$0xff] %vm46, 0.0
      %50 = vst.msk [vmem:[#allocation5] sm:$0xff] %vm46, 0.0
    $region25: #{tpu_custom_call.1} parent=1 // pred_fallthru
      _
    %v51 = vld [vmem:[%s0] sm:$0xff]
    %v52 = vpack.c.bf16 %v51, %v51
    %v53 = vld [vmem:[#allocation6] sm:$0xf]
    %v54 = vld [vmem:[#allocation6 + $0x4] sm:$0xf]
    %v55 = vld [vmem:[#allocation6 + $0x8] sm:$0xf]
    %v56 = vld [vmem:[#allocation6 + $0xc] sm:$0xf]
    %v57 = vld [vmem:[#allocation6 + $0x10] sm:$0xf]
    %v58 = vld [vmem:[#allocation6 + $0x14] sm:$0xf]
    %v59 = vld [vmem:[#allocation6 + $0x18] sm:$0xf]
    %v60 = vld [vmem:[#allocation6 + $0x1c] sm:$0xf]
    %v61 = vld [vmem:[#allocation6 + $0x20] sm:$0xf]
    %v62 = vld [vmem:[#allocation6 + $0x24] sm:$0xf]
    %v63 = vld [vmem:[#allocation6 + $0x28] sm:$0xf]
    %v64 = vld [vmem:[#allocation6 + $0x2c] sm:$0xf]
    %v65 = vld [vmem:[#allocation6 + $0x30] sm:$0xf]
    %v66 = vld [vmem:[#allocation6 + $0x34] sm:$0xf]
    %v67 = vld [vmem:[#allocation6 + $0x38] sm:$0xf]
    %v68 = vld [vmem:[#allocation6 + $0x3c] sm:$0xf]
    %v69 = vld [vmem:[#allocation6 + $0x40] sm:$0xf]
    %v70 = vld [vmem:[#allocation6 + $0x44] sm:$0xf]
    %v71 = vld [vmem:[#allocation6 + $0x48] sm:$0xf]
    %v72 = vld [vmem:[#allocation6 + $0x4c] sm:$0xf]
    %v73 = vld [vmem:[#allocation6 + $0x50] sm:$0xf]
    %v74 = vld [vmem:[#allocation6 + $0x54] sm:$0xf]
    %v75 = vld [vmem:[#allocation6 + $0x58] sm:$0xf]
    %v76 = vld [vmem:[#allocation6 + $0x5c] sm:$0xf]
    %v77 = vld [vmem:[#allocation6 + $0x60] sm:$0xf]
    %v78 = vld [vmem:[#allocation6 + $0x64] sm:$0xf]
    %v79 = vld [vmem:[#allocation6 + $0x68] sm:$0xf]
    %v80 = vld [vmem:[#allocation6 + $0x6c] sm:$0xf]
    %v81 = vld [vmem:[#allocation6 + $0x70] sm:$0xf]
    %v82 = vld [vmem:[#allocation6 + $0x74] sm:$0xf]
    %v83 = vld [vmem:[#allocation6 + $0x78] sm:$0xf]
    %v84 = vld [vmem:[#allocation6 + $0x7c] sm:$0xf]
    %v117 = vunpack.c.l.b16 %v53
    %v118 = vunpack.c.l.b16 %v54
    %v119 = vunpack.c.l.b16 %v55
    %v120 = vunpack.c.l.b16 %v56
    %v121 = vunpack.c.l.b16 %v57
    %v122 = vunpack.c.l.b16 %v58
    %v123 = vunpack.c.l.b16 %v59
    %v124 = vunpack.c.l.b16 %v60
    %v125 = vunpack.c.l.b16 %v61
    %v126 = vunpack.c.l.b16 %v62
    %v127 = vunpack.c.l.b16 %v63
    %v128 = vunpack.c.l.b16 %v64
    %v129 = vunpack.c.l.b16 %v65
    %v130 = vunpack.c.l.b16 %v66
    %v131 = vunpack.c.l.b16 %v67
    %v132 = vunpack.c.l.b16 %v68
    %v133 = vunpack.c.l.b16 %v69
    %v134 = vunpack.c.l.b16 %v70
    %v135 = vunpack.c.l.b16 %v71
    %v136 = vunpack.c.l.b16 %v72
    %v137 = vunpack.c.l.b16 %v73
    %v138 = vunpack.c.l.b16 %v74
    %v139 = vunpack.c.l.b16 %v75
    %v140 = vunpack.c.l.b16 %v76
    %v141 = vunpack.c.l.b16 %v77
    %v142 = vunpack.c.l.b16 %v78
    %v143 = vunpack.c.l.b16 %v79
    %v144 = vunpack.c.l.b16 %v80
    %v145 = vunpack.c.l.b16 %v81
    %v146 = vunpack.c.l.b16 %v82
    %v147 = vunpack.c.l.b16 %v83
    %v148 = vunpack.c.l.b16 %v84
    %v149 = vpack.c.b16 %v118, %v117
    %v150 = vpack.c.b16 %v120, %v119
    %v151 = vpack.c.b16 %v122, %v121
    %v152 = vpack.c.b16 %v124, %v123
    %v153 = vpack.c.b16 %v126, %v125
    %v154 = vpack.c.b16 %v128, %v127
    %v155 = vpack.c.b16 %v130, %v129
    %v156 = vpack.c.b16 %v132, %v131
    %v157 = vpack.c.b16 %v134, %v133
    %v158 = vpack.c.b16 %v136, %v135
    %v159 = vpack.c.b16 %v138, %v137
    %v160 = vpack.c.b16 %v140, %v139
    %v161 = vpack.c.b16 %v142, %v141
    %v162 = vpack.c.b16 %v144, %v143
    %v163 = vpack.c.b16 %v146, %v145
    %v164 = vpack.c.b16 %v148, %v147
    %181 = vmatprep.subr.bf16.mxu0 0
    %182 = vmatpush1.bf16.xpose.msra.mxu0 %v156
    %183 = vmatprep.subr.bf16.mxu0 0
    %184 = vmatpush1.bf16.xpose.msra.mxu0 %v155
    %185 = vmatprep.subr.bf16.mxu0 0
    %186 = vmatpush1.bf16.xpose.msra.mxu0 %v154
    %187 = vmatprep.subr.bf16.mxu0 0
    %188 = vmatpush1.bf16.xpose.msra.mxu0 %v153
    %189 = vmatprep.subr.bf16.mxu0 0
    %190 = vmatpush1.bf16.xpose.msra.mxu0 %v152
    %191 = vmatprep.subr.bf16.mxu0 0
    %192 = vmatpush1.bf16.xpose.msra.mxu0 %v151
    %193 = vmatprep.subr.bf16.mxu0 0
    %194 = vmatpush1.bf16.xpose.msra.mxu0 %v150
    %195 = vmatprep.subr.bf16.mxu0 0
    %196 = vmatpush1.bf16.xpose.msra.mxu0 %v149
    %197 = vmatprep.subr.bf16.mxu0 0
    %198 = vmatpush2.bf16.xpose.msra.mxu0 %v164
    %199 = vmatprep.subr.bf16.mxu0 0
    %200 = vmatpush2.bf16.xpose.msra.mxu0 %v163
    %201 = vmatprep.subr.bf16.mxu0 0
    %202 = vmatpush2.bf16.xpose.msra.mxu0 %v162
    %203 = vmatprep.subr.bf16.mxu0 0
    %204 = vmatpush2.bf16.xpose.msra.mxu0 %v161
    %205 = vmatprep.subr.bf16.mxu0 0
    %206 = vmatpush2.bf16.xpose.msra.mxu0 %v160
    %207 = vmatprep.subr.bf16.mxu0 0
    %208 = vmatpush2.bf16.xpose.msra.mxu0 %v159
    %209 = vmatprep.subr.bf16.mxu0 0
    %210 = vmatpush2.bf16.xpose.msra.mxu0 %v158
    %211 = vmatprep.subr.bf16.mxu0 0
    %212 = vmatpush2.bf16.xpose.msra.mxu0 %v157
    %213 = vmatprep.mubr.bf16.mxu0 0
    %214 = vmatmul.mubr.bf16.gmra.mxu0 %v52
    %v215 = vpop.f32.mrf.mxu0
    %v216 = vadd.f32 0.0, %v215
    %v217 = vpop.f32.mrf.mxu0
    %v218 = vadd.f32 0.0, %v217
    %v219 = vpop.f32.mrf.mxu0
    %v220 = vpop.f32.mrf.mxu0
    %221 = vdwg.mxu0
    %v222 = vld [vmem:[#allocation2] sm:$0xff]
    %224 = vset.pattern.permute.xlu0 0
    %225 = vperm.xlu0 %224, %v222
    %v226 = vpop.permute.xlu0 %225
    %v228 = vmul.f32 %v216, %v226
    %v229 = vmul.f32 %v218, %v226
    %v230 = vld [vmem:[%s2] sm:$0xff]
    %s231 = smul.u32 0, 256
    %v232 = vstv %s231
    %v233 = vsub.s32 %v230, %v232
    %v234 = vlaneseq
    %v235 = vand.u32 %v234, 127
    %v236 = vadd.s32 %v235, 128
    %237 = vset.pattern.permute.xlu0 0
    %238 = vperm.xlu0 %237, %v233
    %v239 = vpop.permute.xlu0 %238
    %vm240 = vcmp.eq.s32.totalorder %v235, %v239
    %vm241 = vcmp.eq.s32.totalorder %v236, %v239
    %vm242 = vcmp.ge.s32.totalorder %v233, 0
    %vm243 = vcmp.lt.s32.totalorder %v233, 256
    %vm244 = vmand %vm242, %vm243
    %v245 = vsel %vm240, %v228, 0.0
    %v246 = vsel %vm241, %v229, 0.0
    %v247 = vadd.f32 %v245, %v246
    %248 = vadd.xlane.f32.xlu0 %v247
    %v249 = vpop.xlane.xlu0 %248
    %v250 = vmul.f32 %v249, 0.015625
    %v251 = vmul.f32 %v250, %v250
    %v252 = vsub.f32 1.0, %v251
    %v253 = vmax.f32 %v252, 0.0
    %v254 = vrsqrt.pop %v253
    %v255 = vmul.f32 %v253, %v254
    %vm256 = vcmp.eq.f32.partialorder %v253, inf
    %v257 = vsel %vm256, %v253, %v255
    %vm258 = vcmp.eq.f32.partialorder %v253, 0.0
    %v259 = vand.u32 %v253, 2147483648
    %v260 = vsel %vm258, %v259, %v257
    %v261 = vmul.f32 %v250, 0.87758255
    %v262 = vmul.f32 %v260, 0.47942555
    %v263 = vsub.f32 %v261, %v262
    %vm264 = vcmp.gt.f32.partialorder %v250, -0.87758255
    %v265 = vsub.f32 %v250, 0.23971277
    %v266 = vsel %vm264, %v263, %v265
    %v267 = vsub.f32 %v266, %v250
    %v268 = vmul.f32 %v267, 64.0
    %v269 = vsel %vm244, %v268, 0.0
    %271 = vset.pattern.permute.xlu0 0
    %272 = vperm.xlu0 %271, %v269
    %v273 = vpop.permute.xlu0 %272
    %v275 = vsel %vm240, %v273, 0.0
    %v276 = vsel %vm241, %v273, 0.0
    %v277 = vadd.f32 %v228, %v275
    %v278 = vadd.f32 %v229, %v276
    %279 = vst [vmem:[#allocation9] sm:$0xff] %v277
    %280 = vst [vmem:[#allocation9 + $0x8] sm:$0xff] %v278
    %v281 = vld [vmem:[%s3] sm:$0x3]
    %v283 = vlaneseq
    %v284 = vshrl.u32 %v283, 7
    %v285 = vsub.s32 0, %v284
    %v286 = vrot.slane %v281, %v285
    %v287 = vlaneseq
    %v288 = vshrl.u32 %v287, 7
    %v289 = vsub.s32 1, %v288
    %v290 = vrot.slane %v281, %v289
    %v293 = vadd.f32 %v277, %v286
    %v294 = vadd.f32 %v278, %v290
    %v295 = vld [vmem:[#allocation3] sm:$0xff]
    %v296 = vmax.f32 %v293, %v294
    %297 = vmax.xlane.f32.xlu0 %v296
    %v298 = vpop.xlane.xlu0 %297
    %v299 = vmax.f32 %v295, %v298
    %v300 = vsub.f32 %v295, %v299
    %v301 = vmul.f32 %v300, 1.442695
    %v302 = vpow.pop %v301
    %v303 = vld [vmem:[#allocation4] sm:$0xff]
    %v304 = vmul.f32 %v302, %v303
    %306 = vset.pattern.permute.xlu0 0
    %307 = vperm.xlu0 %306, %v299
    %v308 = vpop.permute.xlu0 %307
    %v310 = vsub.f32 %v293, %v308
    %v311 = vsub.f32 %v294, %v308
    %v312 = vmul.f32 %v310, 1.442695
    %v313 = vpow.pop %v312
    %v314 = vmul.f32 %v311, 1.442695
    %v315 = vpow.pop %v314
    %v316 = vadd.f32 %v313, %v315
    %317 = vadd.xlane.f32.xlu0 %v316
    %v318 = vpop.xlane.xlu0 %317
    %v319 = vadd.f32 %v304, %v318
    %vm320 = vcmask 7168
    %321 = vst.msk [vmem:[#allocation4] sm:$0xff] %vm320, %v319
    %322 = vst.msk [vmem:[#allocation3] sm:$0xff] %vm320, %v299
    %v323 = vld [vmem:[#allocation5] sm:$0xff]
    %v324 = vadd.f32 %v323, %v249
    %v325 = vadd.f32 %v324, %v269
    %326 = vst.msk [vmem:[#allocation5] sm:$0xff] %vm320, %v325
    // Predicated region
    $region26: #{tpu_custom_call.1} parent=1 // pred_check
      %p327 = pneg %p35
    $region27: #{tpu_custom_call.1} parent=1 // pred_check_branch
      %329 = sbr.rel (%p327) target = $region29
    $region28: #{tpu_custom_call.1} parent=1 // pred_region
      %v330 = vld [vmem:[#allocation3] sm:$0xff]
      %v331 = vld [vmem:[#allocation4] sm:$0xff]
      %v332 = vlog2.pop %v331
      %v333 = vmul.f32 %v332, 0.6931472
      %v334 = vadd.f32 %v330, %v333
      %v335 = vld [vmem:[#allocation5] sm:$0xff]
      %v336 = vsub.f32 %v334, %v335
      %337 = vst.msk [vmem:[%s5] sm:$0xff] %vm320, %v336
    $region29: #{tpu_custom_call.1} parent=1 // pred_fallthru
      _
    // Predicated region
    $region30: #{tpu_custom_call.1} parent=1 // pred_check
      _
    $region31: #{tpu_custom_call.1} parent=1 // pred_check_branch
      %339 = sbr.rel (0) target = $region33
    $region32: #{tpu_custom_call.1} parent=1 // pred_region
      %s341 = ssub.s32 256, 256
      %342 = vsyncadd [#allocation8], %s341
      %s344 = sshll.u32 [#allocation9], 4
      %s345 = int_to_ptr.vmem [resolvable:$true] %s344
      %347 = dma.vmem_to_hbm [thread:$0]  %s345, 256, %s4, [#allocation8]
    $region33: #{tpu_custom_call.1} parent=1 // pred_fallthru
      _
    // Predicated region
    $region34: #{tpu_custom_call.1} parent=1 // pred_check
      _
    $region35: #{tpu_custom_call.1} parent=1 // pred_check_branch
      %349 = sbr.rel (0) target = $region37
    $region36: #{tpu_custom_call.1} parent=1 // pred_region
      _
    $region37: #{tpu_custom_call.1} parent=1 // pred_fallthru
      _
    // Predicated region
    $region38: #{tpu_custom_call.1} parent=1 // pred_check
      _
    $region39: #{tpu_custom_call.1} parent=1 // pred_check_branch
      %351 = sbr.rel (0) target = $region41
    $region40: #{tpu_custom_call.1} parent=1 // pred_region
      %352 = dma.done [#allocation8], 256
    $region41: #{tpu_custom_call.1} parent=1 // pred_fallthru
      _
    // Predicated region
    $region42: #{tpu_custom_call.1} parent=1 // pred_check
      _
    $region43: #{tpu_custom_call.1} parent=1 // pred_check_branch
      %354 = sbr.rel (0) target = $region45
    $region44: #{tpu_custom_call.1} parent=1 // pred_region
      _
    $region45: #{tpu_custom_call.1} parent=1 // pred_fallthru
      _
    %355 = vsyncpa [#allocation7], 1
    %356 = vsyncpa [#allocation8], 1

</llo_original>
